<compile_context>
chip_gen: v7x
topology: tpu7x:2x2x1
jax: 0.10.0
libtpu: 0.0.40
codegen_flags: <defaults>
</compile_context>

<pallas_src>
import functools

import jax
import jax.numpy as jnp
from jax.experimental import pallas as pl
from jax.experimental.pallas import tpu as pltpu

_MIB = 1024 * 1024


def _round_up(a, b):
    return (a + b - 1) // b * b


def _tpu_vmem_capacity_bytes():
    """Physical VMEM per core; fall back to the smallest (v7x, 64 MiB) if unknown."""
    try:
        return int(pltpu.get_tpu_info().vmem_capacity_bytes)
    except Exception:
        return 64 * _MIB


# ----------------------------------------------------------------------------
# Kernels
# ----------------------------------------------------------------------------
def _gct_fused_kernel(x_ref, o_ref, *, c, eps, inv_hw):
    """Single pass: one (1, C, HW) slab per sample (HW need not be 128-aligned)."""
    x = x_ref[...]                                                    # input dtype
    # Per-channel spatial sum accumulated in f32 (no explicit full f32 copy).
    y = jnp.sum(x, axis=-1, keepdims=True, dtype=jnp.float32) * inv_hw   # (1,C,1)
    # Channel statistics (tiny, f32).
    mean = jnp.mean(y, axis=1, keepdims=True)
    mean_x2 = jnp.mean(y * y, axis=1, keepdims=True)
    var = jnp.maximum(mean_x2 - mean * mean, 0.0)
    y_norm = (y - mean) * jax.lax.rsqrt(var + eps)
    y_t = jnp.exp(y_norm * y_norm * (-0.5 * c))                       # (1, C, 1)
    # Bulk multiply in input dtype; lane-broadcast of the gate is cheap.
    o_ref[...] = x * y_t.astype(o_ref.dtype)


def _gct_pool_gate_kernel(x_ref, g_ref, *, c, eps, inv_hw, hw, hw_tile):
    """Pass 1: per-channel spatial sums over HW tiles -> gate y_t (1, C, 1)."""
    h = pl.program_id(1)

    @pl.when(h == 0)
    def _init():
        g_ref[...] = jnp.zeros_like(g_ref)

    x = x_ref[...]
    if hw % hw_tile != 0:
        # Tail tile reads past HW (garbage on TPU); zero it so it can't bias sums.
        idx = h * hw_tile + jax.lax.broadcasted_iota(jnp.int32, x.shape, 2)
        x = jnp.where(idx < hw, x, jnp.zeros_like(x))
    # TODO(synk): could accumulate into a lane-wide (1, C, 128) scratch and do the
    # cross-lane (XLU) reduce once in the finalize block; kernel is DMA-bound.
    g_ref[...] += jnp.sum(x, axis=-1, keepdims=True, dtype=jnp.float32)

    @pl.when(h == pl.num_programs(1) - 1)
    def _finalize():
        y = g_ref[...] * inv_hw                                       # (1, C, 1)
        mean = jnp.mean(y, axis=1, keepdims=True)
        mean_x2 = jnp.mean(y * y, axis=1, keepdims=True)
        var = jnp.maximum(mean_x2 - mean * mean, 0.0)
        y_norm = (y - mean) * jax.lax.rsqrt(var + eps)
        g_ref[...] = jnp.exp(y_norm * y_norm * (-0.5 * c))


def _gct_apply_kernel(x_ref, g_ref, o_ref):
    """Pass 2: gate-apply on a (1, C, hw_tile) block (OOB tail writes are dropped)."""
    o_ref[...] = x_ref[...] * g_ref[...].astype(o_ref.dtype)


# ----------------------------------------------------------------------------
# Wrapper
# ----------------------------------------------------------------------------
def gct_forward(x, c=2, eps=1e-5, *, _force_two_pass=False, _hw_tile=None):
    """x: (N, C, H, W) -> (N, C, H, W). Matches the PyTorch GCT module."""
    N, C, H, W = x.shape
    HW = H * W
    dtype = x.dtype
    bytes_per = dtype.itemsize
    inv_hw = 1.0 / HW
    cf, ef = float(c), float(eps)

    x_flat = x.reshape(N, C, HW)          # merges trailing dims: layout-preserving

    # ------------------- generation-aware budgets ----------------------------
    vmem_cap = _tpu_vmem_capacity_bytes()
    big_vmem = vmem_cap >= 96 * _MIB           # v5e/v6e: 128 MiB; v7x: 64 MiB
    if big_vmem:
        fused_budget, limit_cap, per_buf, num_tc = 48 * _MIB, 64 * _MIB, 6 * _MIB, 1
    else:
        fused_budget, limit_cap, per_buf, num_tc = 22 * _MIB, 30 * _MIB, 4 * _MIB, 2

    def vmem_limit(footprint):
        return int(min(limit_cap, max(16 * _MIB, footprint + 8 * _MIB)))

    # ------------------- path selection --------------------------------------
    slab = C * HW * bytes_per
    # in + out double-buffered, plus an f32 cast allowance for sub-32-bit inputs.
    fused_footprint = 4 * slab + (C * HW * 4 if bytes_per < 4 else 0)

    # Two-pass tile sizes (pass-1 tile is 2x pass-2: it streams only the input).
    hw_tile2 = max(128, (per_buf // max(1, C * bytes_per)) // 128 * 128)
    if _hw_tile is not None:
        hw_tile2 = int(_hw_tile)
    hw_tile2 = min(hw_tile2, _round_up(HW, 128))
    hw_tile1 = min(2 * hw_tile2, _round_up(HW, 128))
    n_hw1 = pl.cdiv(HW, hw_tile1)
    n_hw2 = pl.cdiv(HW, hw_tile2)

    # v7x has 2 TensorCores: a grid=(1,) fused call leaves one idle, so route
    # batch-1 shapes with >=2 spatial tiles to the (parallel, parallel) pass 2.
    prefer_two_pass = (num_tc > 1) and (N < num_tc) and (n_hw2 >= 2)
    use_fused = ((not _force_two_pass) and (not prefer_two_pass)
                 and fused_footprint <= fused_budget)

    if use_fused:
        # ---------------- fused single-pass path -----------------------------
        out_flat = pl.pallas_call(
            functools.partial(_gct_fused_kernel, c=cf, eps=ef, inv_hw=inv_hw),
            out_shape=jax.ShapeDtypeStruct((N, C, HW), dtype),
            grid_spec=pltpu.PrefetchScalarGridSpec(
                num_scalar_prefetch=0,
                grid=(N,),
                in_specs=[pl.BlockSpec((1, C, HW), lambda i: (i, 0, 0))],
                out_specs=pl.BlockSpec((1, C, HW), lambda i: (i, 0, 0)),
            ),
            compiler_params=pltpu.CompilerParams(
                dimension_semantics=("parallel",),
                vmem_limit_bytes=vmem_limit(fused_footprint)),
            cost_estimate=pl.CostEstimate(
                flops=2 * N * C * HW,
                transcendentals=N * C,
                bytes_accessed=2 * N * C * HW * bytes_per),
        )(x_flat)
    else:
        # ---------------- two-pass tiled path ---------------------------------
        gate_blk = 2 * _round_up(C, 8) * 128 * 4     # padded (1,C,1) f32, 2 bufs
        p1_footprint = 3 * C * hw_tile1 * bytes_per + gate_blk   # 2 bufs + mask temp
        p2_footprint = 4 * C * hw_tile2 * bytes_per + gate_blk

        # Pass 1: pooled per-channel sums + gate y_t, shape (N, C, 1) f32.
        gate = pl.pallas_call(
            functools.partial(_gct_pool_gate_kernel, c=cf, eps=ef,
                              inv_hw=inv_hw, hw=HW, hw_tile=hw_tile1),
            out_shape=jax.ShapeDtypeStruct((N, C, 1), jnp.float32),
            grid_spec=pltpu.PrefetchScalarGridSpec(
                num_scalar_prefetch=0,
                grid=(N, n_hw1),
                in_specs=[pl.BlockSpec((1, C, hw_tile1), lambda n, h: (n, 0, h))],
                out_specs=pl.BlockSpec((1, C, 1), lambda n, h: (n, 0, 0)),
            ),
            compiler_params=pltpu.CompilerParams(
                dimension_semantics=("parallel", "arbitrary"),
                vmem_limit_bytes=vmem_limit(p1_footprint)),
            cost_estimate=pl.CostEstimate(
                flops=N * C * HW,
                transcendentals=N * C,
                bytes_accessed=N * C * HW * bytes_per + N * C * 4),
        )(x_flat)

        # Pass 2: gate apply, both grid axes parallel (keeps both v7x TCs busy).
        out_flat = pl.pallas_call(
            _gct_apply_kernel,
            out_shape=jax.ShapeDtypeStruct((N, C, HW), dtype),
            grid_spec=pltpu.PrefetchScalarGridSpec(
                num_scalar_prefetch=0,
                grid=(N, n_hw2),
                in_specs=[pl.BlockSpec((1, C, hw_tile2), lambda n, h: (n, 0, h)),
                          pl.BlockSpec((1, C, 1), lambda n, h: (n, 0, 0))],
                out_specs=pl.BlockSpec((1, C, hw_tile2), lambda n, h: (n, 0, h)),
            ),
            compiler_params=pltpu.CompilerParams(
                dimension_semantics=("parallel", "parallel"),
                vmem_limit_bytes=vmem_limit(p2_footprint)),
            cost_estimate=pl.CostEstimate(
                flops=N * C * HW,
                transcendentals=0,
                bytes_accessed=2 * N * C * HW * bytes_per + N * C * 4),
        )(x_flat, gate)

    return out_flat.reshape(N, C, H, W)


# ----------------------------------------------------------------------------
# Reference & test
# ----------------------------------------------------------------------------
def _gct_reference(x, c=2, eps=1e-5):
    """Pure-JAX reference mirroring the PyTorch module."""
    y = jnp.mean(x, axis=(2, 3), keepdims=True)
    mean = jnp.mean(y, axis=1, keepdims=True)
    mean_x2 = jnp.mean(y * y, axis=1, keepdims=True)
    var = mean_x2 - mean * mean
    y_norm = (y - mean) / jnp.sqrt(var + eps)
    y_t = jnp.exp(-(y_norm ** 2 / 2 * c))
    return x * y_t


if __name__ == "__main__":
    # 1) Small aligned shape -> fused single-pass path.
    key = jax.random.PRNGKey(0)
    N, C, H, W = 2, 4, 16, 16
    x = jax.random.normal(key, (N, C, H, W), dtype=jnp.float32)
    out = jax.block_until_ready(gct_forward(x, c=2, eps=1e-5))
    ref = _gct_reference(x, c=2, eps=1e-5)
    assert out.shape == (N, C, H, W)
    assert jnp.allclose(out, ref, atol=1e-5, rtol=1e-5), (
        f"fused path max abs err = {jnp.max(jnp.abs(out - ref))}")

    # 2) Non-128-multiple HW (12*12=144) on the fused path -> no host-side pad.
    x3 = jax.random.normal(jax.random.PRNGKey(2), (2, 8, 12, 12), dtype=jnp.float32)
    ref3 = _gct_reference(x3, c=2, eps=1e-5)
    out3 = jax.block_until_ready(gct_forward(x3, c=2, eps=1e-5))
    assert out3.shape == x3.shape
    assert jnp.allclose(out3, ref3, atol=1e-5, rtol=1e-5), (
        f"fused unaligned path max abs err = {jnp.max(jnp.abs(out3 - ref3))}")

    # 3) Two-pass path with masked tail tile (HW=144, pass-2 tile=128 -> 2 tiles).
    out2 = jax.block_until_ready(
        gct_forward(x3, c=2, eps=1e-5, _force_two_pass=True, _hw_tile=128))
    assert out2.shape == x3.shape
    assert jnp.allclose(out2, ref3, atol=1e-5, rtol=1e-5), (
        f"two-pass path max abs err = {jnp.max(jnp.abs(out2 - ref3))}")

    print("KERNEL_OK")
</pallas_src>

<mosaic_0001>
module attributes {stable_mosaic.version = 11 : i64} {
  func.func @_gct_fused_kernel(%arg0: i32, %arg1: memref<1x4x256xf32, #tpu.memory_space<vmem>>, %arg2: memref<1x4x256xf32, #tpu.memory_space<vmem>>) attributes {dimension_semantics = [#tpu.dimension_semantics<parallel>], iteration_bounds = array<i64: 2>, scalar_prefetch = 0 : i64, scratch_operands = 0 : i64, tpu.core_type = #tpu.core_type<tc>, window_params = [{transform_indices = @transform_0, window_bounds = array<i64: 1, 4, 256>}, {transform_indices = @transform_1, window_bounds = array<i64: 1, 4, 256>}]} {
    %c0 = arith.constant 0 : index
    %c0_0 = arith.constant 0 : index
    %c0_1 = arith.constant 0 : index
    %0 = vector.load %arg1[%c0, %c0_0, %c0_1] : memref<1x4x256xf32, #tpu.memory_space<vmem>>, vector<1x4x256xf32>
    %cst = arith.constant dense<0.000000e+00> : vector<1x4xf32>
    %1 = vector.multi_reduction <add>, %0, %cst [2] : vector<1x4x256xf32> to vector<1x4xf32>
    %2 = vector.shape_cast %1 : vector<1x4xf32> to vector<1x4x1xf32>
    %cst_2 = arith.constant 3.906250e-03 : f32
    %3 = vector.broadcast %cst_2 : f32 to vector<1x4x1xf32>
    %4 = arith.mulf %2, %3 : vector<1x4x1xf32>
    %cst_3 = arith.constant dense<0.000000e+00> : vector<1x1xf32>
    %5 = vector.multi_reduction <add>, %4, %cst_3 [1] : vector<1x4x1xf32> to vector<1x1xf32>
    %6 = vector.shape_cast %5 : vector<1x1xf32> to vector<1x1x1xf32>
    %cst_4 = arith.constant 4.000000e+00 : f32
    %7 = vector.broadcast %cst_4 : f32 to vector<1x1x1xf32>
    %8 = arith.divf %6, %7 : vector<1x1x1xf32>
    %9 = arith.mulf %4, %4 : vector<1x4x1xf32>
    %cst_5 = arith.constant dense<0.000000e+00> : vector<1x1xf32>
    %10 = vector.multi_reduction <add>, %9, %cst_5 [1] : vector<1x4x1xf32> to vector<1x1xf32>
    %11 = vector.shape_cast %10 : vector<1x1xf32> to vector<1x1x1xf32>
    %cst_6 = arith.constant 4.000000e+00 : f32
    %12 = vector.broadcast %cst_6 : f32 to vector<1x1x1xf32>
    %13 = arith.divf %11, %12 : vector<1x1x1xf32>
    %14 = arith.mulf %8, %8 : vector<1x1x1xf32>
    %15 = arith.subf %13, %14 : vector<1x1x1xf32>
    %cst_7 = arith.constant 0.000000e+00 : f32
    %16 = vector.broadcast %cst_7 : f32 to vector<1x1x1xf32>
    %17 = arith.maximumf %15, %16 : vector<1x1x1xf32>
    %18 = vector.broadcast %8 : vector<1x1x1xf32> to vector<1x4x1xf32>
    %19 = arith.subf %4, %18 : vector<1x4x1xf32>
    %cst_8 = arith.constant 9.99999974E-6 : f32
    %20 = vector.broadcast %cst_8 : f32 to vector<1x1x1xf32>
    %21 = arith.addf %17, %20 : vector<1x1x1xf32>
    %22 = math.rsqrt %21 : vector<1x1x1xf32>
    %23 = vector.broadcast %22 : vector<1x1x1xf32> to vector<1x4x1xf32>
    %24 = arith.mulf %19, %23 : vector<1x4x1xf32>
    %25 = arith.mulf %24, %24 : vector<1x4x1xf32>
    %cst_9 = arith.constant -1.000000e+00 : f32
    %26 = vector.broadcast %cst_9 : f32 to vector<1x4x1xf32>
    %27 = arith.mulf %25, %26 : vector<1x4x1xf32>
    %28 = math.exp %27 : vector<1x4x1xf32>
    %29 = vector.broadcast %28 : vector<1x4x1xf32> to vector<1x4x256xf32>
    %30 = arith.mulf %0, %29 : vector<1x4x256xf32>
    %c0_10 = arith.constant 0 : index
    %c0_11 = arith.constant 0 : index
    %c0_12 = arith.constant 0 : index
    %31 = vector.load %arg2[%c0_10, %c0_11, %c0_12] : memref<1x4x256xf32, #tpu.memory_space<vmem>>, vector<1x4x256xf32>
    tpu.vector_store %arg2[%c0_10, %c0_11, %c0_12], %30 {strides = array<i32>} : memref<1x4x256xf32, #tpu.memory_space<vmem>>, vector<1x4x256xf32>,
    return
  }
  func.func @transform_0(%arg0: i32) -> (i32, i32, i32) {
    %c0_i32 = arith.constant 0 : i32
    %c0_i32_0 = arith.constant 0 : i32
    %c0_i32_1 = arith.constant 0 : i32
    return %arg0, %c0_i32, %c0_i32_0 : i32, i32, i32
  }
  func.func @transform_1(%arg0: i32) -> (i32, i32, i32) {
    %c0_i32 = arith.constant 0 : i32
    %c0_i32_0 = arith.constant 0 : i32
    %c0_i32_1 = arith.constant 0 : i32
    return %arg0, %c0_i32, %c0_i32_0 : i32, i32, i32
  }
}

</mosaic_0001>

<llo_original>
// kernel: tpu_custom_call.1
$region0: #{tpu_custom_call.1}
  #allocation0 [shape = 'u32[]', space=smem, size = 0x4, offset = 0x4, fixed_abs, tag = 'smem constant byte address 0x4 - core index']
  #allocation1 [shape = 'u32[144,128]{1,0:T(1,128)}', space=vmem, size = 0x12000, scoped, tag = 'internal scratch']
  %s0 = inlined_call_operand.hbm [shape: f32[2,4,256], index: 0, kind: input, shape index: {}]
  %s1 = inlined_call_operand.hbm [shape: f32[2,4,256], index: 1, kind: output, shape index: {}]
  %s2 = sld [smem:[#allocation0]]
  $region41: #{tpu_custom_call.1} parent=0
    _
  %s4 = ssub.s32 1, %s2
  %s5 = scalar_select 0, %s4, %s2
  $region1: #{tpu_custom_call.1} parent=0
    #allocation2 [shape = 'u8[8192]{0}', space=vmem, size = 0x2000, scoped, tag = 'input window, operand 0']
    #allocation3 [shape = 's32[2]{0}', space=sflag, size = 0x8, scoped, tag = 'scoped memory for tpu_custom_call.1']
    #allocation4 [shape = 's32[2]{0}', space=sflag, size = 0x8, scoped, tag = 'scoped memory for tpu_custom_call.1']
    #allocation5 [shape = 'u8[8192]{0}', space=vmem, size = 0x2000, scoped, tag = 'output window, operand 0']
    %6 = vsyncpa [#allocation3], 0
    %s7 = scalar_lea.sflag [#allocation3], 1
    %8 = vsyncpa %s7, 0
    %9 = vsyncpa [#allocation4], 0
    %s10 = scalar_lea.sflag [#allocation4], 1
    %11 = vsyncpa %s10, 0
    loop: start=0, step=1, limit=4
    $region2: #{tpu_custom_call.1} parent=1 // loop_pre_header
      _
    $region3: #{tpu_custom_call.1} parent=1 // loop_header
      %s13 = sphi 0, %s17
      %p14 = scmp.ge.s32.totalorder %s13, 4
      %s23 = sphi 0, %s25
      %s26 = sphi 0, %s23
      %s27 = sphi 0, %s26
      %s43 = sphi 0, %s27
      %s49 = sphi 0, %s51
      %s52 = sphi 0, %s49
      %s53 = sphi 0, %s52
      %s69 = sphi 0, %s53
    $region4: #{tpu_custom_call.1} parent=1 // loop_header_branch
      %16 = sbr.rel (%p14) target = $region8
    $region5: #{tpu_custom_call.1} parent=1 // loop_body
      %s18 = ssub.s32 %s13, 1
      %s19 = ssub.s32 %s13, 2
      %s20 = sadd.s32 %s13, 1
      %s21 = ssub.s32 %s13, %s20
      %p22 = scmp.eq.s32.totalorder %s21, 0
      %s24 = sadd.s32 %s23, 1
      %s25 = scalar_select %p22, %s23, %s24
      %p28 = pneg %p22
      %p29 = scmp.eq.s32.totalorder %s13, 1
      %p30 = por %p28, %p29
      %p31 = scmp.ne.s32.totalorder %s23, %s26
      %p32 = scmp.eq.s32.totalorder %s13, 0
      %p33 = por %p31, %p32
      %p34 = scmp.ne.s32.totalorder %s23, %s26
      %p35 = scmp.eq.s32.totalorder %s18, 1
      %p36 = por %p34, %p35
      %p37 = scmp.ne.s32.totalorder %s26, %s27
      %p38 = scmp.eq.s32.totalorder %s18, 0
      %p39 = por %p37, %p38
      %p40 = scmp.ne.s32.totalorder %s26, %s27
      %p41 = scmp.eq.s32.totalorder %s19, 1
      %p42 = por %p40, %p41
      %p44 = scmp.ne.s32.totalorder %s27, %s43
      %p45 = scmp.eq.s32.totalorder %s19, 0
      %p46 = por %p44, %p45
      %s47 = ssub.s32 %s13, %s20
      %p48 = scmp.eq.s32.totalorder %s47, 0
      %s50 = sadd.s32 %s49, 1
      %s51 = scalar_select %p48, %s49, %s50
      %p54 = pneg %p48
      %p55 = scmp.eq.s32.totalorder %s13, 1
      %p56 = por %p54, %p55
      %p57 = scmp.ne.s32.totalorder %s49, %s52
      %p58 = scmp.eq.s32.totalorder %s13, 0
      %p59 = por %p57, %p58
      %p60 = scmp.ne.s32.totalorder %s49, %s52
      %p61 = scmp.eq.s32.totalorder %s18, 1
      %p62 = por %p60, %p61
      %p63 = scmp.ne.s32.totalorder %s52, %s53
      %p64 = scmp.eq.s32.totalorder %s18, 0
      %p65 = por %p63, %p64
      %p66 = scmp.ne.s32.totalorder %s52, %s53
      %p67 = scmp.eq.s32.totalorder %s19, 1
      %p68 = por %p66, %p67
      %p70 = scmp.ne.s32.totalorder %s53, %s69
      %p71 = scmp.eq.s32.totalorder %s19, 0
      %p72 = por %p70, %p71
      %p73 = scmp.le.s32.totalorder 1, %s13
      %p74 = scmp.lt.s32.totalorder %s13, 3
      %p75 = pnand %p73, %p74
      %p76 = pneg %p75
      // Predicated region
      $region9: #{tpu_custom_call.1} parent=5 // pred_check
        _
      $region10: #{tpu_custom_call.1} parent=5 // pred_check_branch
        %78 = sbr.rel (%p75) target = $region12
      $region11: #{tpu_custom_call.1} parent=5 // pred_region
        %s79 = ssub.s32 %s13, 1
      $region12: #{tpu_custom_call.1} parent=5 // pred_fallthru
        _
      %p80 = scmp.lt.s32.totalorder %s13, 2
      // Predicated region
      $region13: #{tpu_custom_call.1} parent=5 // pred_check
        %p81 = pneg %p80
      $region14: #{tpu_custom_call.1} parent=5 // pred_check_branch
        %83 = sbr.rel (%p81) target = $region16
      $region15: #{tpu_custom_call.1} parent=5 // pred_region
        // Predicated region
        $region17: #{tpu_custom_call.1} parent=15 // pred_check
          %p84 = pneg %p33
        $region18: #{tpu_custom_call.1} parent=15 // pred_check_branch
          %86 = sbr.rel (%p84) target = $region20
        $region19: #{tpu_custom_call.1} parent=15 // pred_region
          %s87 = sand.u32 %s23, 1
          %s88 = scalar_lea.sflag [#allocation3], %s87
          %s89 = sand.u32 %s23, 1
          %s90 = smul.addr %s89, 8
          %s91 = scalar_lea.vmem [#allocation2], %s90
          %s93 = ssub.s32 128, 128
          %94 = vsyncadd %s88, %s93
          %s95 = smul.addr %s13, 2
          %s96 = smul.addr %s95, 64
          %s97 = scalar_lea.hbm %s0, %s96
          %s99 = sshll.u32 %s91, 4
          %s100 = int_to_ptr.vmem [resolvable:$true] %s99
          %102 = dma.hbm_to_vmem [thread:$0]  %s97, 128, %s100, %s88
        $region20: #{tpu_custom_call.1} parent=15 // pred_fallthru
          _
      $region16: #{tpu_custom_call.1} parent=5 // pred_fallthru
        _
      %p103 = scmp.le.s32.totalorder 1, %s13
      %p104 = scmp.lt.s32.totalorder %s13, 3
      %p105 = pnand %p103, %p104
      %p106 = pneg %p105
      // Predicated region
      $region21: #{tpu_custom_call.1} parent=5 // pred_check
        _
      $region22: #{tpu_custom_call.1} parent=5 // pred_check_branch
        %108 = sbr.rel (%p105) target = $region24
      $region23: #{tpu_custom_call.1} parent=5 // pred_region
        %s109 = ssub.s32 %s13, 1
        %s110 = sand.u32 %s26, 1
        %s111 = scalar_lea.sflag [#allocation3], %s110
        %s112 = sand.u32 %s26, 1
        %s113 = smul.addr %s112, 8
        %s114 = scalar_lea.vmem [#allocation2], %s113
        // Predicated region
        $region25: #{tpu_custom_call.1} parent=23 // pred_check
          %p115 = pneg %p39
        $region26: #{tpu_custom_call.1} parent=23 // pred_check_branch
          %117 = sbr.rel (%p115) target = $region28
        $region27: #{tpu_custom_call.1} parent=23 // pred_region
          %118 = dma.done %s111, 128
        $region28: #{tpu_custom_call.1} parent=23 // pred_fallthru
          _
        %s119 = sand.u32 %s26, 1
        %s120 = scalar_lea.sflag [#allocation3], %s119
        %s121 = sand.u32 %s26, 1
        %s122 = smul.addr %s121, 8
        %s123 = scalar_lea.vmem [#allocation2], %s122
        %p124 = pneg %p39
        %p125 = pneg %p36
        %p126 = pneg %p65
        %p127 = pneg %p62
        %s128 = sand.u32 %s52, 1
        %s129 = scalar_lea.sflag [#allocation4], %s128
        %s130 = sand.u32 %s52, 1
        %s131 = smul.addr %s130, 8
        %s132 = scalar_lea.vmem [#allocation5], %s131
        %v133 = vld [vmem:[%s114] sm:$0xff]
        %v135 = vcombine.high %v133, %v133
        %vm137 = vcmask 1043456
        %v138 = vsel %vm137, %v133, 0.0
        %v139 = vsel %vm137, %v135, 0.0
        %v140 = vadd.f32 %v138, %v139
        %141 = vadd.xlane.f32.xlu0 %v140
        %v142 = vpop.xlane.xlu0 %141
        %v143 = vmul.f32 %v142, 0.00390625
        %v144 = vsel %vm137, %v143, 0.0
        %v145 = vrot.slane %v144, 4
        %v146 = vadd.f32 %v144, %v145
        %v147 = vrot.slane %v146, 2
        %v148 = vadd.f32 %v146, %v147
        %v149 = vrot.slane %v148, 1
        %v150 = vadd.f32 %v148, %v149
        %v151 = vrcp.pop 4.0
        %v152 = vmul.f32 %v150, %v151
        %v153 = vmul.f32 %v143, %v143
        %v154 = vsel %vm137, %v153, 0.0
        %v155 = vrot.slane %v154, 4
        %v156 = vadd.f32 %v154, %v155
        %v157 = vrot.slane %v156, 2
        %v158 = vadd.f32 %v156, %v157
        %v159 = vrot.slane %v158, 1
        %v160 = vadd.f32 %v158, %v159
        %v161 = vmul.f32 %v160, %v151
        %v162 = vmul.f32 %v152, %v152
        %v163 = vsub.f32 %v161, %v162
        %v164 = vmax.f32 %v163, 0.0
        %v165 = vsub.f32 %v143, %v152
        %v166 = vadd.f32 %v164, 1e-05
        %v167 = vrsqrt.pop %v166
        %v168 = vmul.f32 %v165, %v167
        %v169 = vmul.f32 %v168, %v168
        %v170 = vmul.f32 %v169, -1.0
        %v171 = vmul.f32 %v170, 1.442695
        %v172 = vpow.pop %v171
        %v175 = vunpack.c.l.s4 839922192
        %v176 = vunpack.c.0.s8 %v175
        %v177 = vlaneseq
        %v178 = vshrl.u32 %v177, 7
        %v179 = vsub.s32 %v176, %v178
        %v180 = vrot.slane %v172, %v179
        %v182 = vmul.f32 %v133, %v180
        %183 = vst [vmem:[%s132] sm:$0xff] %v182
        %s184 = sand.u32 %s52, 1
        %s185 = scalar_lea.sflag [#allocation4], %s184
        %s186 = sand.u32 %s52, 1
        %s187 = smul.addr %s186, 8
        %s188 = scalar_lea.vmem [#allocation5], %s187
        // Predicated region
        $region29: #{tpu_custom_call.1} parent=23 // pred_check
          %p189 = pneg %p62
        $region30: #{tpu_custom_call.1} parent=23 // pred_check_branch
          %191 = sbr.rel (%p189) target = $region32
        $region31: #{tpu_custom_call.1} parent=23 // pred_region
          %s193 = ssub.s32 128, 128
          %194 = vsyncadd %s185, %s193
          %s195 = smul.addr %s18, 2
          %s196 = smul.addr %s195, 64
          %s197 = scalar_lea.hbm %s1, %s196
          %s199 = sshll.u32 %s188, 4
          %s200 = int_to_ptr.vmem [resolvable:$true] %s199
          %202 = dma.vmem_to_hbm [thread:$0]  %s200, 128, %s197, %s185
        $region32: #{tpu_custom_call.1} parent=23 // pred_fallthru
          _
      $region24: #{tpu_custom_call.1} parent=5 // pred_fallthru
        _
      %p203 = scmp.le.s32.totalorder 2, %s13
      // Predicated region
      $region33: #{tpu_custom_call.1} parent=5 // pred_check
        %p204 = pneg %p203
      $region34: #{tpu_custom_call.1} parent=5 // pred_check_branch
        %206 = sbr.rel (%p204) target = $region36
      $region35: #{tpu_custom_call.1} parent=5 // pred_region
        %s207 = ssub.s32 %s13, 2
        // Predicated region
        $region37: #{tpu_custom_call.1} parent=35 // pred_check
          %p208 = pneg %p68
        $region38: #{tpu_custom_call.1} parent=35 // pred_check_branch
          %210 = sbr.rel (%p208) target = $region40
        $region39: #{tpu_custom_call.1} parent=35 // pred_region
          %s211 = sand.u32 %s53, 1
          %s212 = scalar_lea.sflag [#allocation4], %s211
          %s213 = sand.u32 %s53, 1
          %s214 = smul.addr %s213, 8
          %s215 = scalar_lea.vmem [#allocation5], %s214
          %216 = dma.done %s212, 128
        $region40: #{tpu_custom_call.1} parent=35 // pred_fallthru
          _
      $region36: #{tpu_custom_call.1} parent=5 // pred_fallthru
        _
    $region6: #{tpu_custom_call.1} parent=1 // loop_footer
      %s17 = sadd.s32 1, %s13
    $region7: #{tpu_custom_call.1} parent=1 // loop_footer_branch
      %12 = sbr.rel target = $region3
    $region8: #{tpu_custom_call.1} parent=1 // loop_exit
      _
    %217 = vsyncpa [#allocation3], 1
    %s218 = scalar_lea.sflag [#allocation3], 1
    %219 = vsyncpa %s218, 1
    %220 = vsyncpa [#allocation4], 1
    %s221 = scalar_lea.sflag [#allocation4], 1
    %222 = vsyncpa %s221, 1

</llo_original>
